<compile_context>
chip_gen: v7x
topology: tpu7x:2x2x1
jax: 0.10.0
libtpu: 0.0.40
codegen_flags: <defaults>
</compile_context>

<pallas_src>
import functools

import jax
import jax.numpy as jnp
from jax import lax
from jax.experimental import pallas as pl
from jax.experimental.pallas import tpu as pltpu


def _round_up(x, m):
    return (x + m - 1) // m * m


# ----------------------------------------------------------------------------
# Pallas kernel: RNN-T joint network -> (blank log-prob, label log-prob) planes
# ----------------------------------------------------------------------------
def _joint_kernel(enc_ref, dec_ref, tgt_ref, wje_ref, wjd_ref, bj_ref,
                  wo_ref, bo_ref, blank_out_ref, label_out_ref, *, blank_idx):
    """One (batch, time-tile) patch of the RNN-T joint.

    enc_ref: [1, TILE_T, Eep] bf16    dec_ref: [1, U1p, Edp] bf16
    tgt_ref: [1, U1p, 1] int32 (extended targets, blank-padded)
    wje_ref: [Eep, Hp] bf16   wjd_ref: [Edp, Hp] bf16   bj_ref: [1, Hp] f32
    wo_ref : [Hp, Vp]  bf16   bo_ref : [1, Vp] f32 (-1e30 on padded lanes)
    blank_out_ref / label_out_ref: [1, U1p, TILE_T] f32  (time on lanes)
    """
    enc = enc_ref[0]                       # [TILE_T, Eep]
    dec = dec_ref[0]                       # [U1p, Edp]

    # concat-split joint Linear: enc part + (dec part + bias), f32 accumulate.
    ep = jnp.dot(enc, wje_ref[...], preferred_element_type=jnp.float32)
    dp = jnp.dot(dec, wjd_ref[...],
                 preferred_element_type=jnp.float32) + bj_ref[...]

    tt = ep.shape[0]
    u1, hp = dp.shape

    # Batched joint in [U1p, TILE_T, Hp] orientation so the reduced planes come
    # out with time on the lane axis (lane-dense stores).
    h = jnp.tanh(dp[:, None, :] + ep[None, :, :])           # f32
    h2 = h.reshape(u1 * tt, hp).astype(wo_ref.dtype)         # bf16 for MXU

    logits = jnp.dot(h2, wo_ref[...],
                     preferred_element_type=jnp.float32) + bo_ref[...]
    vp = logits.shape[-1]

    # One fused, numerically-stable log-softmax over the vocab lanes.
    m = jnp.max(logits, axis=-1, keepdims=True)
    s = logits - m
    lse = jnp.log(jnp.sum(jnp.exp(s), axis=-1, keepdims=True))
    logp = (s - lse).reshape(u1, tt, vp)                      # [U1p, TILE_T, Vp]

    # Vocab-selection masks built in-register (no [N,U1,V] one-hot in HBM).
    lab = tgt_ref[0]                                          # [U1p, 1] int32
    vocab_iota = lax.broadcasted_iota(jnp.int32, (u1, vp), 1)
    label_mask = (vocab_iota == lab).astype(jnp.float32)      # [U1p, Vp]
    blank_mask = (vocab_iota == blank_idx).astype(jnp.float32)

    # Reduce the lattice in-register: only the blank/label planes leave VMEM.
    blank_plane = jnp.sum(logp * blank_mask[:, None, :], axis=-1)   # [U1p, TILE_T]
    label_plane = jnp.sum(logp * label_mask[:, None, :], axis=-1)

    blank_out_ref[0] = blank_plane.astype(blank_out_ref.dtype)
    label_out_ref[0] = label_plane.astype(label_out_ref.dtype)


def joint_blank_label_logprobs(enc_state, dec_state, tgt_ext,
                               w_joint, b_joint, w_out, b_out, blank_idx,
                               compute_dtype=jnp.bfloat16):
    """enc [N,T,Ee], dec [N,U1,Ed], tgt_ext [N,U1] -> (blank_lp, label_lp) [N,T,U1]."""
    N, T, Ee = enc_state.shape
    _, U1, Ed = dec_state.shape
    H = w_joint.shape[1]
    V = w_out.shape[1]
    f32 = jnp.float32

    # --- pad feature dims to lane multiples of 128, U1 to a sublane multiple of 8
    Eep = _round_up(Ee, 128)
    Edp = _round_up(Ed, 128)
    Hp = _round_up(H, 128)
    Vp = _round_up(V, 128)
    U1p = _round_up(U1, 8)

    # --- pick TILE_T.  Time is the output lane axis, so a tile must be either
    #     the full (padded) T or a multiple of 128.  Sized against a
    #     conservative VMEM budget for the f32/bf16 intermediates.
    T8 = _round_up(T, 8)
    if T8 <= 128:
        tile_t = T8
    else:
        per_row_bytes = Hp * 6 + Vp * 12
        budget = 6 * 1024 * 1024
        tile_t = budget // (per_row_bytes * U1p)
        tile_t = max(128, min(512, (tile_t // 128) * 128))
    T_pad = _round_up(T, tile_t)
    n_t = T_pad // tile_t

    # --- zero/-inf pad operands (mathematically inert)
    enc_p = jnp.pad(enc_state.astype(compute_dtype),
                    ((0, 0), (0, T_pad - T), (0, Eep - Ee)))
    dec_p = jnp.pad(dec_state.astype(compute_dtype),
                    ((0, 0), (0, U1p - U1), (0, Edp - Ed)))
    tgt_p = jnp.pad(tgt_ext.astype(jnp.int32), ((0, 0), (0, U1p - U1)),
                    constant_values=blank_idx)[..., None]       # [N, U1p, 1]
    wje = jnp.pad(w_joint[:Ee].astype(compute_dtype),
                  ((0, Eep - Ee), (0, Hp - H)))
    wjd = jnp.pad(w_joint[Ee:].astype(compute_dtype),
                  ((0, Edp - Ed), (0, Hp - H)))
    bj = jnp.pad(b_joint.astype(f32), (0, Hp - H)).reshape(1, Hp)
    wo = jnp.pad(w_out.astype(compute_dtype), ((0, Hp - H), (0, Vp - V)))
    bo = jnp.pad(b_out.astype(f32), (0, Vp - V),
                 constant_values=-1e30).reshape(1, Vp)

    kernel = functools.partial(_joint_kernel, blank_idx=int(blank_idx))

    grid_spec = pltpu.PrefetchScalarGridSpec(
        num_scalar_prefetch=0,
        grid=(N, n_t),
        in_specs=[
            pl.BlockSpec((1, tile_t, Eep), lambda n, ti: (n, ti, 0)),
            pl.BlockSpec((1, U1p, Edp), lambda n, ti: (n, 0, 0)),
            pl.BlockSpec((1, U1p, 1), lambda n, ti: (n, 0, 0)),
            pl.BlockSpec((Eep, Hp), lambda n, ti: (0, 0)),
            pl.BlockSpec((Edp, Hp), lambda n, ti: (0, 0)),
            pl.BlockSpec((1, Hp), lambda n, ti: (0, 0)),
            pl.BlockSpec((Hp, Vp), lambda n, ti: (0, 0)),
            pl.BlockSpec((1, Vp), lambda n, ti: (0, 0)),
        ],
        out_specs=[
            pl.BlockSpec((1, U1p, tile_t), lambda n, ti: (n, 0, ti)),
            pl.BlockSpec((1, U1p, tile_t), lambda n, ti: (n, 0, ti)),
        ],
    )

    blank_ut, label_ut = pl.pallas_call(
        kernel,
        out_shape=(jax.ShapeDtypeStruct((N, U1p, T_pad), f32),
                   jax.ShapeDtypeStruct((N, U1p, T_pad), f32)),
        grid_spec=grid_spec,
        compiler_params=pltpu.CompilerParams(
            dimension_semantics=("parallel", "parallel"),
            vmem_limit_bytes=32 * 1024 * 1024),
    )(enc_p, dec_p, tgt_p, wje, wjd, bj, wo, bo)

    # [N, U1p, T_pad] -> [N, T, U1] (tiny transpose outside the kernel)
    blank_lp = jnp.transpose(blank_ut[:, :U1, :T], (0, 2, 1))
    label_lp = jnp.transpose(label_ut[:, :U1, :T], (0, 2, 1))
    return blank_lp, label_lp


# ----------------------------------------------------------------------------
# RNN-T loss (per-sample alpha DP as nested lax.scan, vmapped over batch)
# ----------------------------------------------------------------------------
def rnnt_loss_per_sample(blank_lp, label_lp, t_len, u_len):
    """blank_lp/label_lp [T, U1] -> scalar negative log-likelihood."""
    T, U1 = blank_lp.shape

    # row 0: alpha[0,u] = sum_{k<u} label_lp[0,k]
    alpha0 = jnp.concatenate(
        [jnp.zeros((1,), jnp.float32), jnp.cumsum(label_lp[0, :U1 - 1])])

    def row_step(alpha_prev, xs):
        blank_prev_row, label_row = xs            # blank_lp[t-1], label_lp[t]
        a = alpha_prev + blank_prev_row           # blank transition

        def u_step(carry, x):
            a_u, lab_prev = x
            val = jnp.logaddexp(a_u, carry + lab_prev)
            return val, val

        _, rest = lax.scan(u_step, a[0], (a[1:], label_row[:U1 - 1]))
        alpha_t = jnp.concatenate([a[:1], rest])
        return alpha_t, alpha_t

    _, rows = lax.scan(row_step, alpha0, (blank_lp[:T - 1], label_lp[1:]))
    alpha = jnp.concatenate([alpha0[None], rows], axis=0)        # [T, U1]

    ll = alpha[t_len - 1, u_len] + blank_lp[t_len - 1, u_len]
    return -ll


# ----------------------------------------------------------------------------
# Full Transducer forward (encoder / decoder stand-ins + Pallas joint + loss)
# ----------------------------------------------------------------------------
def transducer_forward(params, inputs, targets, inputs_len, targets_len,
                       blank_idx):
    # --- encoder (stand-in for CTC_ASR; see TODO at top) ---
    enc_h = jnp.tanh(inputs @ params["w_enc"] + params["b_enc"])
    enc_state = enc_h @ params["w_ctc_out"] + params["b_ctc_out"]   # [N,T,Ee]

    # --- decoder (stand-in for LM; F.pad(targets,[1,0],value=blank)) ---
    padded = jnp.pad(targets, ((0, 0), (1, 0)), constant_values=blank_idx)
    dec_h = params["embed"][padded]                                 # [N,U1,emb]
    dec_state = dec_h @ params["w_lm_out"] + params["b_lm_out"]     # [N,U1,Ed]

    # extended targets for the label plane (last slot is unused by the DP)
    tgt_ext = jnp.concatenate(
        [targets,
         jnp.full((targets.shape[0], 1), blank_idx, targets.dtype)], axis=1)

    # --- joint network (Pallas kernel), reduced to blank/label planes ---
    blank_lp, label_lp = joint_blank_label_logprobs(
        enc_state, dec_state, tgt_ext,
        params["w_joint"], params["b_joint"],
        params["w_out"], params["b_out"], blank_idx)

    # --- RNN-T loss ---
    losses = jax.vmap(rnnt_loss_per_sample)(blank_lp, label_lp,
                                            inputs_len, targets_len)
    return losses.mean(), (blank_lp, label_lp, enc_state, dec_state)


# ----------------------------------------------------------------------------
# Reference joint (plain JAX, f32) for a correctness sanity check
# ----------------------------------------------------------------------------
def joint_ref(enc_state, dec_state, w_joint, b_joint, w_out, b_out):
    N, T, Ee = enc_state.shape
    _, U1, Ed = dec_state.shape
    cat = jnp.concatenate(
        [jnp.broadcast_to(enc_state[:, :, None, :], (N, T, U1, Ee)),
         jnp.broadcast_to(dec_state[:, None, :, :], (N, T, U1, Ed))],
        axis=-1)
    h = jnp.tanh(cat @ w_joint + b_joint)
    logits = h @ w_out + b_out
    return jax.nn.log_softmax(logits, axis=-1)


# ----------------------------------------------------------------------------
if __name__ == "__main__":
    key = jax.random.PRNGKey(0)

    # small config
    N, T, D = 2, 8, 16          # batch, time, acoustic feature dim
    U = 5                       # target length (U+1 after blank prepend)
    vocab = 16
    blank_idx = 0
    enc_hidden = 32             # in_features of original ctc_out
    emb_dim = 32                # in_features of original lm_out
    encoder_nout = 32
    decoder_nout = 32
    nhid = 32

    keys = jax.random.split(key, 12)
    params = {
        "w_enc":     0.1 * jax.random.normal(keys[0], (D, enc_hidden), jnp.float32),
        "b_enc":     0.1 * jax.random.normal(keys[1], (enc_hidden,), jnp.float32),
        "w_ctc_out": 0.1 * jax.random.normal(keys[2], (enc_hidden, encoder_nout), jnp.float32),
        "b_ctc_out": 0.1 * jax.random.normal(keys[3], (encoder_nout,), jnp.float32),
        "embed":     0.1 * jax.random.normal(keys[4], (vocab, emb_dim), jnp.float32),
        "w_lm_out":  0.1 * jax.random.normal(keys[5], (emb_dim, decoder_nout), jnp.float32),
        "b_lm_out":  0.1 * jax.random.normal(keys[6], (decoder_nout,), jnp.float32),
        "w_joint":   0.1 * jax.random.normal(keys[7], (encoder_nout + decoder_nout, nhid), jnp.float32),
        "b_joint":   0.1 * jax.random.normal(keys[8], (nhid,), jnp.float32),
        "w_out":     0.1 * jax.random.normal(keys[9], (nhid, vocab), jnp.float32),
        "b_out":     0.1 * jax.random.normal(keys[10], (vocab,), jnp.float32),
    }

    inputs = jax.random.normal(keys[11], (N, T, D), jnp.float32)
    targets = jax.random.randint(jax.random.PRNGKey(1), (N, U), 1, vocab,
                                 dtype=jnp.int32)
    inputs_len = jnp.array([T, T - 2], dtype=jnp.int32)
    targets_len = jnp.array([U, U - 2], dtype=jnp.int32)

    fwd = jax.jit(functools.partial(transducer_forward, blank_idx=blank_idx))
    loss, (blank_lp, label_lp, enc_state, dec_state) = fwd(
        params, inputs, targets, inputs_len, targets_len)
    jax.block_until_ready(loss)

    # --- sanity check the Pallas joint against a plain-JAX f32 reference ---
    ref_logp = joint_ref(enc_state, dec_state, params["w_joint"],
                         params["b_joint"], params["w_out"], params["b_out"])
    tgt_ext = jnp.concatenate(
        [targets, jnp.full((N, 1), blank_idx, targets.dtype)], axis=1)
    blank_ref = ref_logp[..., blank_idx]                          # [N,T,U+1]
    label_ref = jnp.take_along_axis(
        ref_logp,
        jnp.broadcast_to(tgt_ext[:, None, :, None], (N, T, U + 1, 1)),
        axis=3)[..., 0]

    # bf16 MXU inputs -> slightly loose tolerance vs the f32 reference
    assert jnp.allclose(blank_lp, blank_ref, atol=2e-2, rtol=2e-2), "blank mismatch"
    assert jnp.allclose(label_lp, label_ref, atol=2e-2, rtol=2e-2), "label mismatch"

    loss_ref = jax.vmap(rnnt_loss_per_sample)(
        blank_ref, label_ref, inputs_len, targets_len).mean()
    assert jnp.allclose(loss, loss_ref, atol=5e-2, rtol=5e-2), "loss mismatch"
    assert jnp.isfinite(loss), "non-finite loss"

    print("KERNEL_OK")
</pallas_src>

<mosaic_0001>
module attributes {stable_mosaic.version = 11 : i64} {
  func.func @_joint_kernel(%arg0: i32, %arg1: i32, %arg2: memref<1x8x128xbf16, #tpu.memory_space<vmem>>, %arg3: memref<1x8x128xbf16, #tpu.memory_space<vmem>>, %arg4: memref<1x8x1xi32, #tpu.memory_space<vmem>>, %arg5: memref<128x128xbf16, #tpu.memory_space<vmem>>, %arg6: memref<128x128xbf16, #tpu.memory_space<vmem>>, %arg7: memref<1x128xf32, #tpu.memory_space<vmem>>, %arg8: memref<128x128xbf16, #tpu.memory_space<vmem>>, %arg9: memref<1x128xf32, #tpu.memory_space<vmem>>, %arg10: memref<1x8x8xf32, #tpu.memory_space<vmem>>, %arg11: memref<1x8x8xf32, #tpu.memory_space<vmem>>) attributes {dimension_semantics = [#tpu.dimension_semantics<parallel>, #tpu.dimension_semantics<parallel>], iteration_bounds = array<i64: 2, 1>, scalar_prefetch = 0 : i64, scratch_operands = 0 : i64, tpu.core_type = #tpu.core_type<tc>, window_params = [{transform_indices = @transform_0, window_bounds = array<i64: 1, 8, 128>}, {transform_indices = @transform_1, window_bounds = array<i64: 1, 8, 128>}, {transform_indices = @transform_2, window_bounds = array<i64: 1, 8, 1>}, {pipeline_mode = #tpu.pipeline_mode<synchronous>, transform_indices = @transform_3, window_bounds = array<i64: 128, 128>}, {pipeline_mode = #tpu.pipeline_mode<synchronous>, transform_indices = @transform_4, window_bounds = array<i64: 128, 128>}, {pipeline_mode = #tpu.pipeline_mode<synchronous>, transform_indices = @transform_5, window_bounds = array<i64: 1, 128>}, {pipeline_mode = #tpu.pipeline_mode<synchronous>, transform_indices = @transform_6, window_bounds = array<i64: 128, 128>}, {pipeline_mode = #tpu.pipeline_mode<synchronous>, transform_indices = @transform_7, window_bounds = array<i64: 1, 128>}, {transform_indices = @transform_8, window_bounds = array<i64: 1, 8, 8>}, {transform_indices = @transform_9, window_bounds = array<i64: 1, 8, 8>}]} {
    %c0 = arith.constant 0 : index
    %c0_0 = arith.constant 0 : index
    %c0_1 = arith.constant 0 : index
    %0 = vector.load %arg2[%c0, %c0_0, %c0_1] : memref<1x8x128xbf16, #tpu.memory_space<vmem>>, vector<1x8x128xbf16>
    %1 = vector.shape_cast %0 : vector<1x8x128xbf16> to vector<8x128xbf16>
    %c0_2 = arith.constant 0 : index
    %c0_3 = arith.constant 0 : index
    %c0_4 = arith.constant 0 : index
    %2 = vector.load %arg3[%c0_2, %c0_3, %c0_4] : memref<1x8x128xbf16, #tpu.memory_space<vmem>>, vector<1x8x128xbf16>
    %3 = vector.shape_cast %2 : vector<1x8x128xbf16> to vector<8x128xbf16>
    %c0_5 = arith.constant 0 : index
    %c0_6 = arith.constant 0 : index
    %4 = vector.load %arg5[%c0_5, %c0_6] : memref<128x128xbf16, #tpu.memory_space<vmem>>, vector<128x128xbf16>
    %cst = arith.constant dense<0.000000e+00> : vector<8x128xf32>
    %5 = tpu.matmul %1, %4, %cst {dimension_numbers = #tpu.dot_dimension_numbers<[1], [0], [0], [1], [0, 0, 1, 1], [], []>} : vector<8x128xbf16>, vector<128x128xbf16>, vector<8x128xf32> -> vector<8x128xf32>
    %c0_7 = arith.constant 0 : index
    %c0_8 = arith.constant 0 : index
    %6 = vector.load %arg6[%c0_7, %c0_8] : memref<128x128xbf16, #tpu.memory_space<vmem>>, vector<128x128xbf16>
    %cst_9 = arith.constant dense<0.000000e+00> : vector<8x128xf32>
    %7 = tpu.matmul %3, %6, %cst_9 {dimension_numbers = #tpu.dot_dimension_numbers<[1], [0], [0], [1], [0, 0, 1, 1], [], []>} : vector<8x128xbf16>, vector<128x128xbf16>, vector<8x128xf32> -> vector<8x128xf32>
    %c0_10 = arith.constant 0 : index
    %c0_11 = arith.constant 0 : index
    %8 = vector.load %arg7[%c0_10, %c0_11] : memref<1x128xf32, #tpu.memory_space<vmem>>, vector<1x128xf32>
    %9 = vector.broadcast %8 : vector<1x128xf32> to vector<8x128xf32>
    %10 = arith.addf %7, %9 : vector<8x128xf32>
    %11 = vector.shape_cast %10 : vector<8x128xf32> to vector<8x1x128xf32>
    %12 = vector.shape_cast %5 : vector<8x128xf32> to vector<1x8x128xf32>
    %13 = vector.broadcast %11 : vector<8x1x128xf32> to vector<8x8x128xf32>
    %14 = vector.broadcast %12 : vector<1x8x128xf32> to vector<8x8x128xf32>
    %15 = arith.addf %13, %14 : vector<8x8x128xf32>
    %16 = math.tanh %15 : vector<8x8x128xf32>
    %17 = vector.shape_cast %16 : vector<8x8x128xf32> to vector<64x128xf32>
    %18 = arith.truncf %17 : vector<64x128xf32> to vector<64x128xbf16>
    %c0_12 = arith.constant 0 : index
    %c0_13 = arith.constant 0 : index
    %19 = vector.load %arg8[%c0_12, %c0_13] : memref<128x128xbf16, #tpu.memory_space<vmem>>, vector<128x128xbf16>
    %cst_14 = arith.constant dense<0.000000e+00> : vector<64x128xf32>
    %20 = tpu.matmul %18, %19, %cst_14 {dimension_numbers = #tpu.dot_dimension_numbers<[1], [0], [0], [1], [0, 0, 1, 1], [], []>} : vector<64x128xbf16>, vector<128x128xbf16>, vector<64x128xf32> -> vector<64x128xf32>
    %c0_15 = arith.constant 0 : index
    %c0_16 = arith.constant 0 : index
    %21 = vector.load %arg9[%c0_15, %c0_16] : memref<1x128xf32, #tpu.memory_space<vmem>>, vector<1x128xf32>
    %22 = vector.broadcast %21 : vector<1x128xf32> to vector<64x128xf32>
    %23 = arith.addf %20, %22 : vector<64x128xf32>
    %cst_17 = arith.constant dense<0xFF800000> : vector<64xf32>
    %24 = vector.multi_reduction <maximumf>, %23, %cst_17 [1] : vector<64x128xf32> to vector<64xf32>
    %25 = vector.shape_cast %24 : vector<64xf32> to vector<64x1xf32>
    %26 = vector.broadcast %25 : vector<64x1xf32> to vector<64x128xf32>
    %27 = arith.subf %23, %26 : vector<64x128xf32>
    %28 = math.exp %27 : vector<64x128xf32>
    %cst_18 = arith.constant dense<0.000000e+00> : vector<64xf32>
    %29 = vector.multi_reduction <add>, %28, %cst_18 [1] : vector<64x128xf32> to vector<64xf32>
    %30 = vector.shape_cast %29 : vector<64xf32> to vector<64x1xf32>
    %31 = math.log %30 : vector<64x1xf32>
    %32 = vector.broadcast %31 : vector<64x1xf32> to vector<64x128xf32>
    %33 = arith.subf %27, %32 : vector<64x128xf32>
    %34 = vector.shape_cast %33 : vector<64x128xf32> to vector<8x8x128xf32>
    %c0_19 = arith.constant 0 : index
    %c0_20 = arith.constant 0 : index
    %c0_21 = arith.constant 0 : index
    %35 = vector.load %arg4[%c0_19, %c0_20, %c0_21] : memref<1x8x1xi32, #tpu.memory_space<vmem>>, vector<1x8x1xi32>
    %36 = vector.shape_cast %35 : vector<1x8x1xi32> to vector<8x1xi32>
    %37 = tpu.iota {dimensions = array<i32: 1>} : vector<8x128xi32>
    %38 = vector.broadcast %36 : vector<8x1xi32> to vector<8x128xi32>
    %39 = arith.cmpi eq, %37, %38 : vector<8x128xi32>
    %40 = arith.extui %39 : vector<8x128xi1> to vector<8x128xi32>
    %41 = arith.sitofp %40 : vector<8x128xi32> to vector<8x128xf32>
    %c0_i32 = arith.constant 0 : i32
    %42 = vector.broadcast %c0_i32 : i32 to vector<8x128xi32>
    %43 = arith.cmpi eq, %37, %42 : vector<8x128xi32>
    %44 = arith.extui %43 : vector<8x128xi1> to vector<8x128xi32>
    %45 = arith.sitofp %44 : vector<8x128xi32> to vector<8x128xf32>
    %46 = vector.shape_cast %45 : vector<8x128xf32> to vector<8x1x128xf32>
    %47 = vector.broadcast %46 : vector<8x1x128xf32> to vector<8x8x128xf32>
    %48 = arith.mulf %34, %47 : vector<8x8x128xf32>
    %cst_22 = arith.constant dense<0.000000e+00> : vector<8x8xf32>
    %49 = vector.multi_reduction <add>, %48, %cst_22 [2] : vector<8x8x128xf32> to vector<8x8xf32>
    %50 = vector.shape_cast %41 : vector<8x128xf32> to vector<8x1x128xf32>
    %51 = vector.broadcast %50 : vector<8x1x128xf32> to vector<8x8x128xf32>
    %52 = arith.mulf %34, %51 : vector<8x8x128xf32>
    %cst_23 = arith.constant dense<0.000000e+00> : vector<8x8xf32>
    %53 = vector.multi_reduction <add>, %52, %cst_23 [2] : vector<8x8x128xf32> to vector<8x8xf32>
    %c0_24 = arith.constant 0 : index
    %c0_25 = arith.constant 0 : index
    %c0_26 = arith.constant 0 : index
    %54 = vector.load %arg10[%c0_24, %c0_25, %c0_26] : memref<1x8x8xf32, #tpu.memory_space<vmem>>, vector<1x8x8xf32>
    %55 = vector.shape_cast %54 : vector<1x8x8xf32> to vector<8x8xf32>
    %56 = vector.shape_cast %49 : vector<8x8xf32> to vector<1x8x8xf32>
    tpu.vector_store %arg10[%c0_24, %c0_25, %c0_26], %56 {strides = array<i32>} : memref<1x8x8xf32, #tpu.memory_space<vmem>>, vector<1x8x8xf32>,
    %c0_27 = arith.constant 0 : index
    %c0_28 = arith.constant 0 : index
    %c0_29 = arith.constant 0 : index
    %57 = vector.load %arg11[%c0_27, %c0_28, %c0_29] : memref<1x8x8xf32, #tpu.memory_space<vmem>>, vector<1x8x8xf32>
    %58 = vector.shape_cast %57 : vector<1x8x8xf32> to vector<8x8xf32>
    %59 = vector.shape_cast %53 : vector<8x8xf32> to vector<1x8x8xf32>
    tpu.vector_store %arg11[%c0_27, %c0_28, %c0_29], %59 {strides = array<i32>} : memref<1x8x8xf32, #tpu.memory_space<vmem>>, vector<1x8x8xf32>,
    return
  }
  func.func @transform_0(%arg0: i32, %arg1: i32) -> (i32, i32, i32) {
    %c0_i32 = arith.constant 0 : i32
    %c0_i32_0 = arith.constant 0 : i32
    return %arg0, %arg1, %c0_i32 : i32, i32, i32
  }
  func.func @transform_1(%arg0: i32, %arg1: i32) -> (i32, i32, i32) {
    %c0_i32 = arith.constant 0 : i32
    %c0_i32_0 = arith.constant 0 : i32
    %c0_i32_1 = arith.constant 0 : i32
    return %arg0, %c0_i32, %c0_i32_0 : i32, i32, i32
  }
  func.func @transform_2(%arg0: i32, %arg1: i32) -> (i32, i32, i32) {
    %c0_i32 = arith.constant 0 : i32
    %c0_i32_0 = arith.constant 0 : i32
    %c0_i32_1 = arith.constant 0 : i32
    return %arg0, %c0_i32, %c0_i32_0 : i32, i32, i32
  }
  func.func @transform_3(%arg0: i32, %arg1: i32) -> (i32, i32) {
    %c0_i32 = arith.constant 0 : i32
    %c0_i32_0 = arith.constant 0 : i32
    %c0_i32_1 = arith.constant 0 : i32
    return %c0_i32, %c0_i32_0 : i32, i32
  }
  func.func @transform_4(%arg0: i32, %arg1: i32) -> (i32, i32) {
    %c0_i32 = arith.constant 0 : i32
    %c0_i32_0 = arith.constant 0 : i32
    %c0_i32_1 = arith.constant 0 : i32
    return %c0_i32, %c0_i32_0 : i32, i32
  }
  func.func @transform_5(%arg0: i32, %arg1: i32) -> (i32, i32) {
    %c0_i32 = arith.constant 0 : i32
    %c0_i32_0 = arith.constant 0 : i32
    %c0_i32_1 = arith.constant 0 : i32
    return %c0_i32, %c0_i32_0 : i32, i32
  }
  func.func @transform_6(%arg0: i32, %arg1: i32) -> (i32, i32) {
    %c0_i32 = arith.constant 0 : i32
    %c0_i32_0 = arith.constant 0 : i32
    %c0_i32_1 = arith.constant 0 : i32
    return %c0_i32, %c0_i32_0 : i32, i32
  }
  func.func @transform_7(%arg0: i32, %arg1: i32) -> (i32, i32) {
    %c0_i32 = arith.constant 0 : i32
    %c0_i32_0 = arith.constant 0 : i32
    %c0_i32_1 = arith.constant 0 : i32
    return %c0_i32, %c0_i32_0 : i32, i32
  }
  func.func @transform_8(%arg0: i32, %arg1: i32) -> (i32, i32, i32) {
    %c0_i32 = arith.constant 0 : i32
    %c0_i32_0 = arith.constant 0 : i32
    return %arg0, %c0_i32, %arg1 : i32, i32, i32
  }
  func.func @transform_9(%arg0: i32, %arg1: i32) -> (i32, i32, i32) {
    %c0_i32 = arith.constant 0 : i32
    %c0_i32_0 = arith.constant 0 : i32
    return %arg0, %c0_i32, %arg1 : i32, i32, i32
  }
}

</mosaic_0001>

<llo_original>
// kernel: custom-call.7
$region0: #{custom-call.7}
  %s0 = inlined_call_operand.vmem [shape: f32[7,2,6], index: 0, kind: output, shape index: {}]

// kernel: custom-call.9
$region0: #{custom-call.9}
  %s0 = inlined_call_operand.vmem [shape: f32[5,2], index: 0, kind: output, shape index: {}]

// kernel: transducer_forward.1
$region0: #{transducer_forward.1}
  #allocation0 [shape = 'u32[]', space=smem, size = 0x4, offset = 0x4, fixed_abs, tag = 'smem constant byte address 0x4 - core index']
  #allocation1 [shape = 'u32[144,128]{1,0:T(1,128)}', space=vmem, size = 0x12000, scoped, tag = 'internal scratch']
  %s0 = inlined_call_operand.vmem [shape: bf16[2,8,128], index: 0, kind: input, shape index: {}]
  %s1 = inlined_call_operand.vmem [shape: bf16[2,8,128], index: 1, kind: input, shape index: {}]
  %s2 = inlined_call_operand.vmem [shape: s32[2,8,1], index: 2, kind: input, shape index: {}]
  %s3 = inlined_call_operand.vmem [shape: bf16[128,128], index: 3, kind: input, shape index: {}]
  %s4 = inlined_call_operand.vmem [shape: bf16[128,128], index: 4, kind: input, shape index: {}]
  %s5 = inlined_call_operand.vmem [shape: f32[1,128], index: 5, kind: input, shape index: {}]
  %s6 = inlined_call_operand.vmem [shape: bf16[128,128], index: 6, kind: input, shape index: {}]
  %s7 = inlined_call_operand.vmem [shape: f32[1,128], index: 7, kind: input, shape index: {}]
  %s8 = inlined_call_operand.vmem [shape: f32[2,8,8], index: 8, kind: output, shape index: {0}]
  %s9 = inlined_call_operand.vmem [shape: f32[2,8,8], index: 9, kind: output, shape index: {1}]
  %10 = xla_tuple %s8, %s9
  %s11 = sld [smem:[#allocation0]]
  $region73: #{transducer_forward.1} parent=0
    _
  %s13 = ssub.s32 1, %s11
  %s14 = scalar_select 0, %s13, %s11
  loop: start=0, step=1, limit=4
  $region2: #{transducer_forward.1} parent=0 // loop_pre_header
    _
  $region3: #{transducer_forward.1} parent=0 // loop_header
    %s16 = sphi 0, %s20
    %p17 = scmp.ge.s32.totalorder %s16, 4
    %s23 = sphi 0, %s35
    %s24 = sphi 0, %s31
    %s25 = sphi 0, %s23
    %s26 = sphi 0, %s24
    %s27 = sphi 0, %s25
    %s28 = sphi 0, %s26
    %s40 = sphi 0, %s42
    %s43 = sphi 0, %s40
    %s44 = sphi 0, %s43
    %s60 = sphi 0, %s44
    %s66 = sphi 0, %s68
    %s69 = sphi 0, %s66
    %s70 = sphi 0, %s69
    %s86 = sphi 0, %s70
    %s92 = sphi 0, %s94
    %s95 = sphi 0, %s92
    %s96 = sphi 0, %s95
    %s112 = sphi 0, %s96
    %s116 = sphi 0, %s116
    %s118 = sphi 0, %s116
    %s119 = sphi 0, %s118
    %s133 = sphi 0, %s119
    %s137 = sphi 0, %s137
    %s139 = sphi 0, %s137
    %s140 = sphi 0, %s139
    %s154 = sphi 0, %s140
    %s158 = sphi 0, %s158
    %s160 = sphi 0, %s158
    %s161 = sphi 0, %s160
    %s175 = sphi 0, %s161
    %s179 = sphi 0, %s179
    %s181 = sphi 0, %s179
    %s182 = sphi 0, %s181
    %s196 = sphi 0, %s182
    %s200 = sphi 0, %s200
    %s202 = sphi 0, %s200
    %s203 = sphi 0, %s202
    %s217 = sphi 0, %s203
    %s225 = sphi 0, %s227
    %s228 = sphi 0, %s225
    %s229 = sphi 0, %s228
    %s245 = sphi 0, %s229
    %s253 = sphi 0, %s255
    %s256 = sphi 0, %s253
    %s257 = sphi 0, %s256
    %s273 = sphi 0, %s257
  $region4: #{transducer_forward.1} parent=0 // loop_header_branch
    %19 = sbr.rel (%p17) target = $region8
  $region5: #{transducer_forward.1} parent=0 // loop_body
    %s21 = ssub.s32 %s16, 1
    %s22 = ssub.s32 %s16, 2
    %s29 = sadd.s32 1, %s24
    %p30 = scmp.ge.s32.totalorder %s29, 1
    %s31 = scalar_select %p30, 0, %s29
    %s32 = sadd.s32 1, %s23
    %s33 = scalar_select %p30, %s32, %s23
    %p34 = scmp.ge.s32.totalorder %s33, 2
    %s35 = scalar_select %p34, 0, %s33
    %s36 = ssub.s32 %s23, %s35
    %s37 = ssub.s32 %s24, %s31
    %s38 = sor.u32 %s36, %s37
    %p39 = scmp.eq.s32.totalorder %s38, 0
    %s41 = sadd.s32 %s40, 1
    %s42 = scalar_select %p39, %s40, %s41
    %p45 = pneg %p39
    %p46 = scmp.eq.s32.totalorder %s16, 1
    %p47 = por %p45, %p46
    %p48 = scmp.ne.s32.totalorder %s40, %s43
    %p49 = scmp.eq.s32.totalorder %s16, 0
    %p50 = por %p48, %p49
    %p51 = scmp.ne.s32.totalorder %s40, %s43
    %p52 = scmp.eq.s32.totalorder %s21, 1
    %p53 = por %p51, %p52
    %p54 = scmp.ne.s32.totalorder %s43, %s44
    %p55 = scmp.eq.s32.totalorder %s21, 0
    %p56 = por %p54, %p55
    %p57 = scmp.ne.s32.totalorder %s43, %s44
    %p58 = scmp.eq.s32.totalorder %s22, 1
    %p59 = por %p57, %p58
    %p61 = scmp.ne.s32.totalorder %s44, %s60
    %p62 = scmp.eq.s32.totalorder %s22, 0
    %p63 = por %p61, %p62
    %s64 = ssub.s32 %s23, %s35
    %p65 = scmp.eq.s32.totalorder %s64, 0
    %s67 = sadd.s32 %s66, 1
    %s68 = scalar_select %p65, %s66, %s67
    %p71 = pneg %p65
    %p72 = scmp.eq.s32.totalorder %s16, 1
    %p73 = por %p71, %p72
    %p74 = scmp.ne.s32.totalorder %s66, %s69
    %p75 = scmp.eq.s32.totalorder %s16, 0
    %p76 = por %p74, %p75
    %p77 = scmp.ne.s32.totalorder %s66, %s69
    %p78 = scmp.eq.s32.totalorder %s21, 1
    %p79 = por %p77, %p78
    %p80 = scmp.ne.s32.totalorder %s69, %s70
    %p81 = scmp.eq.s32.totalorder %s21, 0
    %p82 = por %p80, %p81
    %p83 = scmp.ne.s32.totalorder %s69, %s70
    %p84 = scmp.eq.s32.totalorder %s22, 1
    %p85 = por %p83, %p84
    %p87 = scmp.ne.s32.totalorder %s70, %s86
    %p88 = scmp.eq.s32.totalorder %s22, 0
    %p89 = por %p87, %p88
    %s90 = ssub.s32 %s23, %s35
    %p91 = scmp.eq.s32.totalorder %s90, 0
    %s93 = sadd.s32 %s92, 1
    %s94 = scalar_select %p91, %s92, %s93
    %p97 = pneg %p91
    %p98 = scmp.eq.s32.totalorder %s16, 1
    %p99 = por %p97, %p98
    %p100 = scmp.ne.s32.totalorder %s92, %s95
    %p101 = scmp.eq.s32.totalorder %s16, 0
    %p102 = por %p100, %p101
    %p103 = scmp.ne.s32.totalorder %s92, %s95
    %p104 = scmp.eq.s32.totalorder %s21, 1
    %p105 = por %p103, %p104
    %p106 = scmp.ne.s32.totalorder %s95, %s96
    %p107 = scmp.eq.s32.totalorder %s21, 0
    %p108 = por %p106, %p107
    %p109 = scmp.ne.s32.totalorder %s95, %s96
    %p110 = scmp.eq.s32.totalorder %s22, 1
    %p111 = por %p109, %p110
    %p113 = scmp.ne.s32.totalorder %s96, %s112
    %p114 = scmp.eq.s32.totalorder %s22, 0
    %p115 = por %p113, %p114
    %s117 = sadd.s32 %s116, 1
    %p120 = scmp.eq.s32.totalorder %s16, 1
    %p121 = scmp.ne.s32.totalorder %s116, %s118
    %p122 = scmp.eq.s32.totalorder %s16, 0
    %p123 = por %p121, %p122
    %p124 = scmp.ne.s32.totalorder %s116, %s118
    %p125 = scmp.eq.s32.totalorder %s21, 1
    %p126 = por %p124, %p125
    %p127 = scmp.ne.s32.totalorder %s118, %s119
    %p128 = scmp.eq.s32.totalorder %s21, 0
    %p129 = por %p127, %p128
    %p130 = scmp.ne.s32.totalorder %s118, %s119
    %p131 = scmp.eq.s32.totalorder %s22, 1
    %p132 = por %p130, %p131
    %p134 = scmp.ne.s32.totalorder %s119, %s133
    %p135 = scmp.eq.s32.totalorder %s22, 0
    %p136 = por %p134, %p135
    %s138 = sadd.s32 %s137, 1
    %p141 = scmp.eq.s32.totalorder %s16, 1
    %p142 = scmp.ne.s32.totalorder %s137, %s139
    %p143 = scmp.eq.s32.totalorder %s16, 0
    %p144 = por %p142, %p143
    %p145 = scmp.ne.s32.totalorder %s137, %s139
    %p146 = scmp.eq.s32.totalorder %s21, 1
    %p147 = por %p145, %p146
    %p148 = scmp.ne.s32.totalorder %s139, %s140
    %p149 = scmp.eq.s32.totalorder %s21, 0
    %p150 = por %p148, %p149
    %p151 = scmp.ne.s32.totalorder %s139, %s140
    %p152 = scmp.eq.s32.totalorder %s22, 1
    %p153 = por %p151, %p152
    %p155 = scmp.ne.s32.totalorder %s140, %s154
    %p156 = scmp.eq.s32.totalorder %s22, 0
    %p157 = por %p155, %p156
    %s159 = sadd.s32 %s158, 1
    %p162 = scmp.eq.s32.totalorder %s16, 1
    %p163 = scmp.ne.s32.totalorder %s158, %s160
    %p164 = scmp.eq.s32.totalorder %s16, 0
    %p165 = por %p163, %p164
    %p166 = scmp.ne.s32.totalorder %s158, %s160
    %p167 = scmp.eq.s32.totalorder %s21, 1
    %p168 = por %p166, %p167
    %p169 = scmp.ne.s32.totalorder %s160, %s161
    %p170 = scmp.eq.s32.totalorder %s21, 0
    %p171 = por %p169, %p170
    %p172 = scmp.ne.s32.totalorder %s160, %s161
    %p173 = scmp.eq.s32.totalorder %s22, 1
    %p174 = por %p172, %p173
    %p176 = scmp.ne.s32.totalorder %s161, %s175
    %p177 = scmp.eq.s32.totalorder %s22, 0
    %p178 = por %p176, %p177
    %s180 = sadd.s32 %s179, 1
    %p183 = scmp.eq.s32.totalorder %s16, 1
    %p184 = scmp.ne.s32.totalorder %s179, %s181
    %p185 = scmp.eq.s32.totalorder %s16, 0
    %p186 = por %p184, %p185
    %p187 = scmp.ne.s32.totalorder %s179, %s181
    %p188 = scmp.eq.s32.totalorder %s21, 1
    %p189 = por %p187, %p188
    %p190 = scmp.ne.s32.totalorder %s181, %s182
    %p191 = scmp.eq.s32.totalorder %s21, 0
    %p192 = por %p190, %p191
    %p193 = scmp.ne.s32.totalorder %s181, %s182
    %p194 = scmp.eq.s32.totalorder %s22, 1
    %p195 = por %p193, %p194
    %p197 = scmp.ne.s32.totalorder %s182, %s196
    %p198 = scmp.eq.s32.totalorder %s22, 0
    %p199 = por %p197, %p198
    %s201 = sadd.s32 %s200, 1
    %p204 = scmp.eq.s32.totalorder %s16, 1
    %p205 = scmp.ne.s32.totalorder %s200, %s202
    %p206 = scmp.eq.s32.totalorder %s16, 0
    %p207 = por %p205, %p206
    %p208 = scmp.ne.s32.totalorder %s200, %s202
    %p209 = scmp.eq.s32.totalorder %s21, 1
    %p210 = por %p208, %p209
    %p211 = scmp.ne.s32.totalorder %s202, %s203
    %p212 = scmp.eq.s32.totalorder %s21, 0
    %p213 = por %p211, %p212
    %p214 = scmp.ne.s32.totalorder %s202, %s203
    %p215 = scmp.eq.s32.totalorder %s22, 1
    %p216 = por %p214, %p215
    %p218 = scmp.ne.s32.totalorder %s203, %s217
    %p219 = scmp.eq.s32.totalorder %s22, 0
    %p220 = por %p218, %p219
    %s221 = ssub.s32 %s23, %s35
    %s222 = ssub.s32 %s24, %s31
    %s223 = sor.u32 %s221, %s222
    %p224 = scmp.eq.s32.totalorder %s223, 0
    %s226 = sadd.s32 %s225, 1
    %s227 = scalar_select %p224, %s225, %s226
    %p230 = pneg %p224
    %p231 = scmp.eq.s32.totalorder %s16, 1
    %p232 = por %p230, %p231
    %p233 = scmp.ne.s32.totalorder %s225, %s228
    %p234 = scmp.eq.s32.totalorder %s16, 0
    %p235 = por %p233, %p234
    %p236 = scmp.ne.s32.totalorder %s225, %s228
    %p237 = scmp.eq.s32.totalorder %s21, 1
    %p238 = por %p236, %p237
    %p239 = scmp.ne.s32.totalorder %s228, %s229
    %p240 = scmp.eq.s32.totalorder %s21, 0
    %p241 = por %p239, %p240
    %p242 = scmp.ne.s32.totalorder %s228, %s229
    %p243 = scmp.eq.s32.totalorder %s22, 1
    %p244 = por %p242, %p243
    %p246 = scmp.ne.s32.totalorder %s229, %s245
    %p247 = scmp.eq.s32.totalorder %s22, 0
    %p248 = por %p246, %p247
    %s249 = ssub.s32 %s23, %s35
    %s250 = ssub.s32 %s24, %s31
    %s251 = sor.u32 %s249, %s250
    %p252 = scmp.eq.s32.totalorder %s251, 0
    %s254 = sadd.s32 %s253, 1
    %s255 = scalar_select %p252, %s253, %s254
    %p258 = pneg %p252
    %p259 = scmp.eq.s32.totalorder %s16, 1
    %p260 = por %p258, %p259
    %p261 = scmp.ne.s32.totalorder %s253, %s256
    %p262 = scmp.eq.s32.totalorder %s16, 0
    %p263 = por %p261, %p262
    %p264 = scmp.ne.s32.totalorder %s253, %s256
    %p265 = scmp.eq.s32.totalorder %s21, 1
    %p266 = por %p264, %p265
    %p267 = scmp.ne.s32.totalorder %s256, %s257
    %p268 = scmp.eq.s32.totalorder %s21, 0
    %p269 = por %p267, %p268
    %p270 = scmp.ne.s32.totalorder %s256, %s257
    %p271 = scmp.eq.s32.totalorder %s22, 1
    %p272 = por %p270, %p271
    %p274 = scmp.ne.s32.totalorder %s257, %s273
    %p275 = scmp.eq.s32.totalorder %s22, 0
    %p276 = por %p274, %p275
    %p277 = scmp.le.s32.totalorder 1, %s16
    %p278 = scmp.lt.s32.totalorder %s16, 3
    %p279 = pnand %p277, %p278
    %p280 = pneg %p279
    // Predicated region
    $region9: #{transducer_forward.1} parent=5 // pred_check
      _
    $region10: #{transducer_forward.1} parent=5 // pred_check_branch
      %282 = sbr.rel (%p279) target = $region12
    $region11: #{transducer_forward.1} parent=5 // pred_region
      %s283 = ssub.s32 %s16, 1
      // Predicated region
      $region13: #{transducer_forward.1} parent=11 // pred_check
        %p284 = pneg %p129
      $region14: #{transducer_forward.1} parent=11 // pred_check_branch
        %286 = sbr.rel (%p284) target = $region16
      $region15: #{transducer_forward.1} parent=11 // pred_region
        _
      $region16: #{transducer_forward.1} parent=11 // pred_fallthru
        _
      // Predicated region
      $region17: #{transducer_forward.1} parent=11 // pred_check
        %p287 = pneg %p150
      $region18: #{transducer_forward.1} parent=11 // pred_check_branch
        %289 = sbr.rel (%p287) target = $region20
      $region19: #{transducer_forward.1} parent=11 // pred_region
        _
      $region20: #{transducer_forward.1} parent=11 // pred_fallthru
        _
      // Predicated region
      $region21: #{transducer_forward.1} parent=11 // pred_check
        %p290 = pneg %p171
      $region22: #{transducer_forward.1} parent=11 // pred_check_branch
        %292 = sbr.rel (%p290) target = $region24
      $region23: #{transducer_forward.1} parent=11 // pred_region
        _
      $region24: #{transducer_forward.1} parent=11 // pred_fallthru
        _
      // Predicated region
      $region25: #{transducer_forward.1} parent=11 // pred_check
        %p293 = pneg %p192
      $region26: #{transducer_forward.1} parent=11 // pred_check_branch
        %295 = sbr.rel (%p293) target = $region28
      $region27: #{transducer_forward.1} parent=11 // pred_region
        _
      $region28: #{transducer_forward.1} parent=11 // pred_fallthru
        _
      // Predicated region
      $region29: #{transducer_forward.1} parent=11 // pred_check
        %p296 = pneg %p213
      $region30: #{transducer_forward.1} parent=11 // pred_check_branch
        %298 = sbr.rel (%p296) target = $region32
      $region31: #{transducer_forward.1} parent=11 // pred_region
        _
      $region32: #{transducer_forward.1} parent=11 // pred_fallthru
        _
    $region12: #{transducer_forward.1} parent=5 // pred_fallthru
      _
    %p299 = scmp.lt.s32.totalorder %s16, 2
    // Predicated region
    $region33: #{transducer_forward.1} parent=5 // pred_check
      %p300 = pneg %p299
    $region34: #{transducer_forward.1} parent=5 // pred_check_branch
      %302 = sbr.rel (%p300) target = $region36
    $region35: #{transducer_forward.1} parent=5 // pred_region
      // Predicated region
      $region37: #{transducer_forward.1} parent=35 // pred_check
        %p303 = pneg %p50
      $region38: #{transducer_forward.1} parent=35 // pred_check_branch
        %305 = sbr.rel (%p303) target = $region40
      $region39: #{transducer_forward.1} parent=35 // pred_region
        %p306 = scmp.lt.s32.totalorder %s23, 1
        %s307 = scalar_select %p306, %s23, 1
        %p308 = scmp.lt.s32.totalorder %s24, 0
        %s309 = scalar_select %p308, %s24, 0
        %s310 = sadd.s32 %s309, %s307
        %s311 = smul.addr %s310, 4
        %s312 = scalar_lea.vmem %s0, %s311
      $region40: #{transducer_forward.1} parent=35 // pred_fallthru
        _
      // Predicated region
      $region41: #{transducer_forward.1} parent=35 // pred_check
        %p313 = pneg %p76
      $region42: #{transducer_forward.1} parent=35 // pred_check_branch
        %315 = sbr.rel (%p313) target = $region44
      $region43: #{transducer_forward.1} parent=35 // pred_region
        %p316 = scmp.lt.s32.totalorder %s23, 1
        %s317 = scalar_select %p316, %s23, 1
        %s318 = smul.addr %s317, 4
        %s319 = scalar_lea.vmem %s1, %s318
      $region44: #{transducer_forward.1} parent=35 // pred_fallthru
        _
      // Predicated region
      $region45: #{transducer_forward.1} parent=35 // pred_check
        %p320 = pneg %p102
      $region46: #{transducer_forward.1} parent=35 // pred_check_branch
        %322 = sbr.rel (%p320) target = $region48
      $region47: #{transducer_forward.1} parent=35 // pred_region
        %p323 = scmp.lt.s32.totalorder %s23, 1
        %s324 = scalar_select %p323, %s23, 1
        %s325 = smul.addr %s324, 8
        %s326 = scalar_lea.vmem %s2, %s325
      $region48: #{transducer_forward.1} parent=35 // pred_fallthru
        _
    $region36: #{transducer_forward.1} parent=5 // pred_fallthru
      _
    %p327 = scmp.le.s32.totalorder 1, %s16
    %p328 = scmp.lt.s32.totalorder %s16, 3
    %p329 = pnand %p327, %p328
    %p330 = pneg %p329
    // Predicated region
    $region49: #{transducer_forward.1} parent=5 // pred_check
      _
    $region50: #{transducer_forward.1} parent=5 // pred_check_branch
      %332 = sbr.rel (%p329) target = $region52
    $region51: #{transducer_forward.1} parent=5 // pred_region
      %s333 = ssub.s32 %s16, 1
      %p334 = scmp.lt.s32.totalorder %s25, 1
      %s335 = scalar_select %p334, %s25, 1
      %p336 = scmp.lt.s32.totalorder %s26, 0
      %s337 = scalar_select %p336, %s26, 0
      %s338 = sadd.s32 %s337, %s335
      %s339 = smul.addr %s338, 4
      %s340 = scalar_lea.vmem %s0, %s339
      %p341 = pneg %p56
      %p342 = pneg %p53
      %p343 = scmp.lt.s32.totalorder %s25, 1
      %s344 = scalar_select %p343, %s25, 1
      %s345 = smul.addr %s344, 4
      %s346 = scalar_lea.vmem %s1, %s345
      %p347 = pneg %p82
      %p348 = pneg %p79
      %p349 = scmp.lt.s32.totalorder %s25, 1
      %s350 = scalar_select %p349, %s25, 1
      %s351 = smul.addr %s350, 8
      %s352 = scalar_lea.vmem %s2, %s351
      %p353 = pneg %p108
      %p354 = pneg %p105
      %p355 = pneg %p129
      %p356 = pneg %p126
      %p357 = pneg %p150
      %p358 = pneg %p147
      %p359 = pneg %p171
      %p360 = pneg %p168
      %p361 = pneg %p192
      %p362 = pneg %p189
      %p363 = pneg %p213
      %p364 = pneg %p210
      %p365 = pneg %p241
      %p366 = pneg %p238
      %p367 = scmp.lt.s32.totalorder %s25, 1
      %s368 = scalar_select %p367, %s25, 1
      %p369 = scmp.lt.s32.totalorder %s26, 0
      %s370 = scalar_select %p369, %s26, 0
      %s371 = sadd.s32 %s370, %s368
      %s372 = smul.addr %s371, 8
      %s373 = scalar_lea.vmem %s8, %s372
      %p374 = pneg %p269
      %p375 = pneg %p266
      %p376 = scmp.lt.s32.totalorder %s25, 1
      %s377 = scalar_select %p376, %s25, 1
      %p378 = scmp.lt.s32.totalorder %s26, 0
      %s379 = scalar_select %p378, %s26, 0
      %s380 = sadd.s32 %s379, %s377
      %s381 = smul.addr %s380, 8
      %s382 = scalar_lea.vmem %s9, %s381
      %p383 = scmp.lt.s32.totalorder %s25, 1
      %s384 = scalar_select %p383, %s25, 1
      %p385 = scmp.lt.s32.totalorder %s26, 0
      %s386 = scalar_select %p385, %s26, 0
      %s387 = sadd.s32 %s386, %s384
      %s388 = smul.addr %s387, 4
      %s389 = scalar_lea.vmem %s0, %s388
      %p390 = scmp.lt.s32.totalorder %s25, 1
      %s391 = scalar_select %p390, %s25, 1
      %s392 = smul.addr %s391, 4
      %s393 = scalar_lea.vmem %s1, %s392
      %p394 = scmp.lt.s32.totalorder %s25, 1
      %s395 = scalar_select %p394, %s25, 1
      %s396 = smul.addr %s395, 8
      %s397 = scalar_lea.vmem %s2, %s396
      %p398 = scmp.lt.s32.totalorder %s25, 1
      %s399 = scalar_select %p398, %s25, 1
      %p400 = scmp.lt.s32.totalorder %s26, 0
      %s401 = scalar_select %p400, %s26, 0
      %s402 = sadd.s32 %s401, %s399
      %s403 = smul.addr %s402, 8
      %s404 = scalar_lea.vmem %s8, %s403
      %p405 = scmp.lt.s32.totalorder %s25, 1
      %s406 = scalar_select %p405, %s25, 1
      %p407 = scmp.lt.s32.totalorder %s26, 0
      %s408 = scalar_select %p407, %s26, 0
      %s409 = sadd.s32 %s408, %s406
      %s410 = smul.addr %s409, 8
      %s411 = scalar_lea.vmem %s9, %s410
      %v413 = vld [vmem:[%s389] sm:$0xf]
      %v414 = vld [vmem:[%s393] sm:$0xf]
      %v415 = vld [vmem:[%s3] sm:$0xf]
      %v416 = vld [vmem:[%s3 + $0x4] sm:$0xf]
      %v417 = vld [vmem:[%s3 + $0x8] sm:$0xf]
      %v418 = vld [vmem:[%s3 + $0xc] sm:$0xf]
      %v419 = vld [vmem:[%s3 + $0x10] sm:$0xf]
      %v420 = vld [vmem:[%s3 + $0x14] sm:$0xf]
      %v421 = vld [vmem:[%s3 + $0x18] sm:$0xf]
      %v422 = vld [vmem:[%s3 + $0x1c] sm:$0xf]
      %v423 = vld [vmem:[%s3 + $0x20] sm:$0xf]
      %v424 = vld [vmem:[%s3 + $0x24] sm:$0xf]
      %v425 = vld [vmem:[%s3 + $0x28] sm:$0xf]
      %v426 = vld [vmem:[%s3 + $0x2c] sm:$0xf]
      %v427 = vld [vmem:[%s3 + $0x30] sm:$0xf]
      %v428 = vld [vmem:[%s3 + $0x34] sm:$0xf]
      %v429 = vld [vmem:[%s3 + $0x38] sm:$0xf]
      %v430 = vld [vmem:[%s3 + $0x3c] sm:$0xf]
      %v447 = vunpack.c.l.b16 %v415
      %v448 = vunpack.c.l.b16 %v416
      %v449 = vunpack.c.l.b16 %v417
      %v450 = vunpack.c.l.b16 %v418
      %v451 = vunpack.c.l.b16 %v419
      %v452 = vunpack.c.l.b16 %v420
      %v453 = vunpack.c.l.b16 %v421
      %v454 = vunpack.c.l.b16 %v422
      %v455 = vunpack.c.l.b16 %v423
      %v456 = vunpack.c.l.b16 %v424
      %v457 = vunpack.c.l.b16 %v425
      %v458 = vunpack.c.l.b16 %v426
      %v459 = vunpack.c.l.b16 %v427
      %v460 = vunpack.c.l.b16 %v428
      %v461 = vunpack.c.l.b16 %v429
      %v462 = vunpack.c.l.b16 %v430
      %v463 = vpack.c.b16 %v448, %v447
      %v464 = vpack.c.b16 %v450, %v449
      %v465 = vpack.c.b16 %v452, %v451
      %v466 = vpack.c.b16 %v454, %v453
      %v467 = vpack.c.b16 %v456, %v455
      %v468 = vpack.c.b16 %v458, %v457
      %v469 = vpack.c.b16 %v460, %v459
      %v470 = vpack.c.b16 %v462, %v461
      %479 = vmatprep.subr.bf16.mxu0 0
      %480 = vmatpush1.bf16.msra.mxu0 %v463
      %481 = vmatprep.subr.bf16.mxu0 0
      %482 = vmatpush1.bf16.msra.mxu0 %v464
      %483 = vmatprep.subr.bf16.mxu0 0
      %484 = vmatpush1.bf16.msra.mxu0 %v465
      %485 = vmatprep.subr.bf16.mxu0 0
      %486 = vmatpush1.bf16.msra.mxu0 %v466
      %487 = vmatprep.subr.bf16.mxu0 0
      %488 = vmatpush1.bf16.msra.mxu0 %v467
      %489 = vmatprep.subr.bf16.mxu0 0
      %490 = vmatpush1.bf16.msra.mxu0 %v468
      %491 = vmatprep.subr.bf16.mxu0 0
      %492 = vmatpush1.bf16.msra.mxu0 %v469
      %493 = vmatprep.subr.bf16.mxu0 0
      %494 = vmatpush1.bf16.msra.mxu0 %v470
      %495 = vmatprep.subr.bf16.mxu0 0
      %496 = vmatpush1.bf16.msra.mxu0 0
      %497 = vmatprep.subr.bf16.mxu0 0
      %498 = vmatpush1.bf16.msra.mxu0 0
      %499 = vmatprep.subr.bf16.mxu0 0
      %500 = vmatpush1.bf16.msra.mxu0 0
      %501 = vmatprep.subr.bf16.mxu0 0
      %502 = vmatpush1.bf16.msra.mxu0 0
      %503 = vmatprep.subr.bf16.mxu0 0
      %504 = vmatpush1.bf16.msra.mxu0 0
      %505 = vmatprep.subr.bf16.mxu0 0
      %506 = vmatpush1.bf16.msra.mxu0 0
      %507 = vmatprep.subr.bf16.mxu0 0
      %508 = vmatpush1.bf16.msra.mxu0 0
      %509 = vmatprep.subr.bf16.mxu0 0
      %510 = vmatpush1.bf16.msra.mxu0 0
      %511 = vmatprep.mubr.bf16.mxu0 0
      %512 = vmatmul.mubr.bf16.gmra.mrb[0].mxu0 %v413
      %v513 = vpop.f32.mrb[0].mxu0
      %v514 = vadd.f32 0.0, %v513
      %v515 = vpop.f32.mrb[0].mxu0
      %v516 = vpop.f32.mrb[0].mxu0
      %v517 = vpop.f32.mrb[0].mxu0
      %518 = vdwg.mxu0
      %v519 = vld [vmem:[%s4] sm:$0xf]
      %v520 = vld [vmem:[%s4 + $0x4] sm:$0xf]
      %v521 = vld [vmem:[%s4 + $0x8] sm:$0xf]
      %v522 = vld [vmem:[%s4 + $0xc] sm:$0xf]
      %v523 = vld [vmem:[%s4 + $0x10] sm:$0xf]
      %v524 = vld [vmem:[%s4 + $0x14] sm:$0xf]
      %v525 = vld [vmem:[%s4 + $0x18] sm:$0xf]
      %v526 = vld [vmem:[%s4 + $0x1c] sm:$0xf]
      %v527 = vld [vmem:[%s4 + $0x20] sm:$0xf]
      %v528 = vld [vmem:[%s4 + $0x24] sm:$0xf]
      %v529 = vld [vmem:[%s4 + $0x28] sm:$0xf]
      %v530 = vld [vmem:[%s4 + $0x2c] sm:$0xf]
      %v531 = vld [vmem:[%s4 + $0x30] sm:$0xf]
      %v532 = vld [vmem:[%s4 + $0x34] sm:$0xf]
      %v533 = vld [vmem:[%s4 + $0x38] sm:$0xf]
      %v534 = vld [vmem:[%s4 + $0x3c] sm:$0xf]
      %v535 = vld [vmem:[%s5] sm:$0x1]
      %v537 = vlaneseq
      %v538 = vshrl.u32 %v537, 7
      %v539 = vsub.s32 0, %v538
      %v540 = vrot.slane %v535, %v539
      %v558 = vunpack.c.l.b16 %v519
      %v559 = vunpack.c.l.b16 %v520
      %v560 = vunpack.c.l.b16 %v521
      %v561 = vunpack.c.l.b16 %v522
      %v562 = vunpack.c.l.b16 %v523
      %v563 = vunpack.c.l.b16 %v524
      %v564 = vunpack.c.l.b16 %v525
      %v565 = vunpack.c.l.b16 %v526
      %v566 = vunpack.c.l.b16 %v527
      %v567 = vunpack.c.l.b16 %v528
      %v568 = vunpack.c.l.b16 %v529
      %v569 = vunpack.c.l.b16 %v530
      %v570 = vunpack.c.l.b16 %v531
      %v571 = vunpack.c.l.b16 %v532
      %v572 = vunpack.c.l.b16 %v533
      %v573 = vunpack.c.l.b16 %v534
      %v574 = vpack.c.b16 %v559, %v558
      %v575 = vpack.c.b16 %v561, %v560
      %v576 = vpack.c.b16 %v563, %v562
      %v577 = vpack.c.b16 %v565, %v564
      %v578 = vpack.c.b16 %v567, %v566
      %v579 = vpack.c.b16 %v569, %v568
      %v580 = vpack.c.b16 %v571, %v570
      %v581 = vpack.c.b16 %v573, %v572
      %590 = vmatprep.subr.bf16.mxu0 0
      %591 = vmatpush1.bf16.msra.mxu0 %v574
      %592 = vmatprep.subr.bf16.mxu0 0
      %593 = vmatpush1.bf16.msra.mxu0 %v575
      %594 = vmatprep.subr.bf16.mxu0 0
      %595 = vmatpush1.bf16.msra.mxu0 %v576
      %596 = vmatprep.subr.bf16.mxu0 0
      %597 = vmatpush1.bf16.msra.mxu0 %v577
      %598 = vmatprep.subr.bf16.mxu0 0
      %599 = vmatpush1.bf16.msra.mxu0 %v578
      %600 = vmatprep.subr.bf16.mxu0 0
      %601 = vmatpush1.bf16.msra.mxu0 %v579
      %602 = vmatprep.subr.bf16.mxu0 0
      %603 = vmatpush1.bf16.msra.mxu0 %v580
      %604 = vmatprep.subr.bf16.mxu0 0
      %605 = vmatpush1.bf16.msra.mxu0 %v581
      %606 = vmatprep.subr.bf16.mxu0 0
      %607 = vmatpush1.bf16.msra.mxu0 0
      %608 = vmatprep.subr.bf16.mxu0 0
      %609 = vmatpush1.bf16.msra.mxu0 0
      %610 = vmatprep.subr.bf16.mxu0 0
      %611 = vmatpush1.bf16.msra.mxu0 0
      %612 = vmatprep.subr.bf16.mxu0 0
      %613 = vmatpush1.bf16.msra.mxu0 0
      %614 = vmatprep.subr.bf16.mxu0 0
      %615 = vmatpush1.bf16.msra.mxu0 0
      %616 = vmatprep.subr.bf16.mxu0 0
      %617 = vmatpush1.bf16.msra.mxu0 0
      %618 = vmatprep.subr.bf16.mxu0 0
      %619 = vmatpush1.bf16.msra.mxu0 0
      %620 = vmatprep.subr.bf16.mxu0 0
      %621 = vmatpush1.bf16.msra.mxu0 0
      %622 = vmatprep.mubr.bf16.mxu0 0
      %623 = vmatmul.mubr.bf16.gmra.mrb[0].mxu0 %v414
      %v624 = vpop.f32.mrb[0].mxu0
      %v625 = vadd.f32 %v540, %v624
      %v626 = vpop.f32.mrb[0].mxu0
      %v627 = vpop.f32.mrb[0].mxu0
      %v628 = vpop.f32.mrb[0].mxu0
      %629 = vdwg.mxu0
      %v631 = vcombine.high %v625, %v625
      %v633 = vunpack.c.l.s4 1966171168
      %v634 = vunpack.c.0.s8 %v633
      %v635 = vlaneseq
      %v636 = vshrl.u32 %v635, 7
      %v637 = vsub.s32 %v634, %v636
      %v638 = vrot.slane %v625, %v637
      %v640 = vunpack.c.l.s4 1966171168
      %v641 = vunpack.c.0.s8 %v640
      %v642 = vlaneseq
      %v643 = vshrl.u32 %v642, 7
      %v644 = vsub.s32 %v641, %v643
      %v645 = vrot.slane %v631, %v644
      %v646 = vcombine.high %v638, %v638
      %v647 = vcombine.high %v645, %v645
      %v649 = vunpack.c.l.s4 1966171168
      %v650 = vunpack.c.0.s8 %v649
      %v651 = vlaneseq
      %v652 = vshrl.u32 %v651, 7
      %v653 = vsub.s32 %v650, %v652
      %v654 = vrot.slane %v638, %v653
      %v656 = vunpack.c.l.s4 1966171168
      %v657 = vunpack.c.0.s8 %v656
      %v658 = vlaneseq
      %v659 = vshrl.u32 %v658, 7
      %v660 = vsub.s32 %v657, %v659
      %v661 = vrot.slane %v645, %v660
      %v663 = vunpack.c.l.s4 1966171168
      %v664 = vunpack.c.0.s8 %v663
      %v665 = vlaneseq
      %v666 = vshrl.u32 %v665, 7
      %v667 = vsub.s32 %v664, %v666
      %v668 = vrot.slane %v646, %v667
      %v670 = vunpack.c.l.s4 1966171168
      %v671 = vunpack.c.0.s8 %v670
      %v672 = vlaneseq
      %v673 = vshrl.u32 %v672, 7
      %v674 = vsub.s32 %v671, %v673
      %v675 = vrot.slane %v647, %v674
      %v676 = vcombine.high %v654, %v654
      %v677 = vcombine.high %v661, %v661
      %v678 = vcombine.high %v668, %v668
      %v679 = vcombine.high %v675, %v675
      %v680 = vlaneseq
      %v681 = vshrl.u32 %v680, 7
      %v682 = vsub.s32 0, %v681
      %v683 = vrot.slane %v654, %v682
      %v684 = vlaneseq
      %v685 = vshrl.u32 %v684, 7
      %v686 = vsub.s32 0, %v685
      %v687 = vrot.slane %v668, %v686
      %v688 = vlaneseq
      %v689 = vshrl.u32 %v688, 7
      %v690 = vsub.s32 0, %v689
      %v691 = vrot.slane %v676, %v690
      %v692 = vlaneseq
      %v693 = vshrl.u32 %v692, 7
      %v694 = vsub.s32 0, %v693
      %v695 = vrot.slane %v678, %v694
      %v696 = vlaneseq
      %v697 = vshrl.u32 %v696, 7
      %v698 = vsub.s32 0, %v697
      %v699 = vrot.slane %v661, %v698
      %v700 = vlaneseq
      %v701 = vshrl.u32 %v700, 7
      %v702 = vsub.s32 0, %v701
      %v703 = vrot.slane %v675, %v702
      %v704 = vlaneseq
      %v705 = vshrl.u32 %v704, 7
      %v706 = vsub.s32 0, %v705
      %v707 = vrot.slane %v677, %v706
      %v708 = vlaneseq
      %v709 = vshrl.u32 %v708, 7
      %v710 = vsub.s32 0, %v709
      %v711 = vrot.slane %v679, %v710
      %v720 = vadd.f32 %v683, %v514
      %v721 = vadd.f32 %v687, %v514
      %v722 = vadd.f32 %v691, %v514
      %v723 = vadd.f32 %v695, %v514
      %v724 = vadd.f32 %v699, %v514
      %v725 = vadd.f32 %v703, %v514
      %v726 = vadd.f32 %v707, %v514
      %v727 = vadd.f32 %v711, %v514
      %v728 = vtanh.pop %v720
      %v729 = vtanh.pop %v721
      %v730 = vtanh.pop %v722
      %v731 = vtanh.pop %v723
      %v732 = vtanh.pop %v724
      %v733 = vtanh.pop %v725
      %v734 = vtanh.pop %v726
      %v735 = vtanh.pop %v727
      %v736 = vpack.c.bf16 %v729, %v728
      %v737 = vpack.c.bf16 %v731, %v730
      %v738 = vpack.c.bf16 %v733, %v732
      %v739 = vpack.c.bf16 %v735, %v734
      %v740 = vld [vmem:[%s6] sm:$0xf]
      %v741 = vld [vmem:[%s6 + $0x4] sm:$0xf]
      %v742 = vld [vmem:[%s6 + $0x8] sm:$0xf]
      %v743 = vld [vmem:[%s6 + $0xc] sm:$0xf]
      %v744 = vld [vmem:[%s6 + $0x10] sm:$0xf]
      %v745 = vld [vmem:[%s6 + $0x14] sm:$0xf]
      %v746 = vld [vmem:[%s6 + $0x18] sm:$0xf]
      %v747 = vld [vmem:[%s6 + $0x1c] sm:$0xf]
      %v748 = vld [vmem:[%s6 + $0x20] sm:$0xf]
      %v749 = vld [vmem:[%s6 + $0x24] sm:$0xf]
      %v750 = vld [vmem:[%s6 + $0x28] sm:$0xf]
      %v751 = vld [vmem:[%s6 + $0x2c] sm:$0xf]
      %v752 = vld [vmem:[%s6 + $0x30] sm:$0xf]
      %v753 = vld [vmem:[%s6 + $0x34] sm:$0xf]
      %v754 = vld [vmem:[%s6 + $0x38] sm:$0xf]
      %v755 = vld [vmem:[%s6 + $0x3c] sm:$0xf]
      %v756 = vld [vmem:[%s7] sm:$0x1]
      %v758 = vlaneseq
      %v759 = vshrl.u32 %v758, 7
      %v760 = vsub.s32 0, %v759
      %v761 = vrot.slane %v756, %v760
      %v779 = vunpack.c.l.b16 %v740
      %v780 = vunpack.c.l.b16 %v741
      %v781 = vunpack.c.l.b16 %v742
      %v782 = vunpack.c.l.b16 %v743
      %v783 = vunpack.c.l.b16 %v744
      %v784 = vunpack.c.l.b16 %v745
      %v785 = vunpack.c.l.b16 %v746
      %v786 = vunpack.c.l.b16 %v747
      %v787 = vunpack.c.l.b16 %v748
      %v788 = vunpack.c.l.b16 %v749
      %v789 = vunpack.c.l.b16 %v750
      %v790 = vunpack.c.l.b16 %v751
      %v791 = vunpack.c.l.b16 %v752
      %v792 = vunpack.c.l.b16 %v753
      %v793 = vunpack.c.l.b16 %v754
      %v794 = vunpack.c.l.b16 %v755
      %v795 = vpack.c.b16 %v780, %v779
      %v796 = vpack.c.b16 %v782, %v781
      %v797 = vpack.c.b16 %v784, %v783
      %v798 = vpack.c.b16 %v786, %v785
      %v799 = vpack.c.b16 %v788, %v787
      %v800 = vpack.c.b16 %v790, %v789
      %v801 = vpack.c.b16 %v792, %v791
      %v802 = vpack.c.b16 %v794, %v793
      %811 = vmatprep.subr.bf16.mxu0 0
      %812 = vmatpush1.bf16.msra.mxu0 %v795
      %813 = vmatprep.subr.bf16.mxu0 0
      %814 = vmatpush1.bf16.msra.mxu0 %v796
      %815 = vmatprep.subr.bf16.mxu0 0
      %816 = vmatpush1.bf16.msra.mxu0 %v797
      %817 = vmatprep.subr.bf16.mxu0 0
      %818 = vmatpush1.bf16.msra.mxu0 %v798
      %819 = vmatprep.subr.bf16.mxu0 0
      %820 = vmatpush1.bf16.msra.mxu0 %v799
      %821 = vmatprep.subr.bf16.mxu0 0
      %822 = vmatpush1.bf16.msra.mxu0 %v800
      %823 = vmatprep.subr.bf16.mxu0 0
      %824 = vmatpush1.bf16.msra.mxu0 %v801
      %825 = vmatprep.subr.bf16.mxu0 0
      %826 = vmatpush1.bf16.msra.mxu0 %v802
      %827 = vmatprep.subr.bf16.mxu0 0
      %828 = vmatpush1.bf16.msra.mxu0 0
      %829 = vmatprep.subr.bf16.mxu0 0
      %830 = vmatpush1.bf16.msra.mxu0 0
      %831 = vmatprep.subr.bf16.mxu0 0
      %832 = vmatpush1.bf16.msra.mxu0 0
      %833 = vmatprep.subr.bf16.mxu0 0
      %834 = vmatpush1.bf16.msra.mxu0 0
      %835 = vmatprep.subr.bf16.mxu0 0
      %836 = vmatpush1.bf16.msra.mxu0 0
      %837 = vmatprep.subr.bf16.mxu0 0
      %838 = vmatpush1.bf16.msra.mxu0 0
      %839 = vmatprep.subr.bf16.mxu0 0
      %840 = vmatpush1.bf16.msra.mxu0 0
      %841 = vmatprep.subr.bf16.mxu0 0
      %842 = vmatpush1.bf16.msra.mxu0 0
      %843 = vmatprep.mubr.bf16.mxu0 0
      %844 = vmatmul.mubr.bf16.gmra.mrb[0].mxu0 %v736
      %v845 = vpop.f32.mrb[0].mxu0
      %v846 = vadd.f32 %v761, %v845
      %v847 = vpop.f32.mrb[0].mxu0
      %v848 = vpop.f32.mrb[0].mxu0
      %v849 = vadd.f32 %v761, %v848
      %v850 = vpop.f32.mrb[0].mxu0
      %851 = vmatprep.mubr.bf16.mxu0 0
      %852 = vmatmul.mubr.bf16.gmra.mrb[0].mxu0 %v737
      %v853 = vpop.f32.mrb[0].mxu0
      %v854 = vadd.f32 %v761, %v853
      %v855 = vpop.f32.mrb[0].mxu0
      %v856 = vpop.f32.mrb[0].mxu0
      %v857 = vadd.f32 %v761, %v856
      %v858 = vpop.f32.mrb[0].mxu0
      %859 = vmatprep.mubr.bf16.mxu0 0
      %860 = vmatmul.mubr.bf16.gmra.mrb[0].mxu0 %v738
      %v861 = vpop.f32.mrb[0].mxu0
      %v862 = vadd.f32 %v761, %v861
      %v863 = vpop.f32.mrb[0].mxu0
      %v864 = vpop.f32.mrb[0].mxu0
      %v865 = vadd.f32 %v761, %v864
      %v866 = vpop.f32.mrb[0].mxu0
      %867 = vmatprep.mubr.bf16.mxu0 0
      %868 = vmatmul.mubr.bf16.gmra.mrb[0].mxu0 %v739
      %v869 = vpop.f32.mrb[0].mxu0
      %v870 = vadd.f32 %v761, %v869
      %v871 = vpop.f32.mrb[0].mxu0
      %v872 = vpop.f32.mrb[0].mxu0
      %v873 = vadd.f32 %v761, %v872
      %v874 = vpop.f32.mrb[0].mxu0
      %875 = vdwg.mxu0
      %876 = vmax.xlane.f32.xlu0 %v846
      %v877 = vpop.xlane.xlu0 %876
      %878 = vmax.xlane.f32.xlu0 %v849
      %v879 = vpop.xlane.xlu0 %878
      %880 = vmax.xlane.f32.xlu0 %v854
      %v881 = vpop.xlane.xlu0 %880
      %882 = vmax.xlane.f32.xlu0 %v857
      %v883 = vpop.xlane.xlu0 %882
      %884 = vmax.xlane.f32.xlu0 %v862
      %v885 = vpop.xlane.xlu0 %884
      %886 = vmax.xlane.f32.xlu0 %v865
      %v887 = vpop.xlane.xlu0 %886
      %888 = vmax.xlane.f32.xlu0 %v870
      %v889 = vpop.xlane.xlu0 %888
      %890 = vmax.xlane.f32.xlu0 %v873
      %v891 = vpop.xlane.xlu0 %890
      %v892 = vsub.f32 %v846, %v877
      %v893 = vsub.f32 %v849, %v879
      %v894 = vsub.f32 %v854, %v881
      %v895 = vsub.f32 %v857, %v883
      %v896 = vsub.f32 %v862, %v885
      %v897 = vsub.f32 %v865, %v887
      %v898 = vsub.f32 %v870, %v889
      %v899 = vsub.f32 %v873, %v891
      %v900 = vmul.f32 %v892, 1.442695
      %v901 = vpow.pop %v900
      %v902 = vmul.f32 %v893, 1.442695
      %v903 = vpow.pop %v902
      %v904 = vmul.f32 %v894, 1.442695
      %v905 = vpow.pop %v904
      %v906 = vmul.f32 %v895, 1.442695
      %v907 = vpow.pop %v906
      %v908 = vmul.f32 %v896, 1.442695
      %v909 = vpow.pop %v908
      %v910 = vmul.f32 %v897, 1.442695
      %v911 = vpow.pop %v910
      %v912 = vmul.f32 %v898, 1.442695
      %v913 = vpow.pop %v912
      %v914 = vmul.f32 %v899, 1.442695
      %v915 = vpow.pop %v914
      %916 = vadd.xlane.f32.xlu0 %v901
      %v917 = vpop.xlane.xlu0 %916
      %918 = vadd.xlane.f32.xlu0 %v903
      %v919 = vpop.xlane.xlu0 %918
      %920 = vadd.xlane.f32.xlu0 %v905
      %v921 = vpop.xlane.xlu0 %920
      %922 = vadd.xlane.f32.xlu0 %v907
      %v923 = vpop.xlane.xlu0 %922
      %924 = vadd.xlane.f32.xlu0 %v909
      %v925 = vpop.xlane.xlu0 %924
      %926 = vadd.xlane.f32.xlu0 %v911
      %v927 = vpop.xlane.xlu0 %926
      %928 = vadd.xlane.f32.xlu0 %v913
      %v929 = vpop.xlane.xlu0 %928
      %930 = vadd.xlane.f32.xlu0 %v915
      %v931 = vpop.xlane.xlu0 %930
      %v932 = vlog2.pop %v917
      %v933 = vmul.f32 %v932, 0.6931472
      %v934 = vlog2.pop %v919
      %v935 = vmul.f32 %v934, 0.6931472
      %v936 = vlog2.pop %v921
      %v937 = vmul.f32 %v936, 0.6931472
      %v938 = vlog2.pop %v923
      %v939 = vmul.f32 %v938, 0.6931472
      %v940 = vlog2.pop %v925
      %v941 = vmul.f32 %v940, 0.6931472
      %v942 = vlog2.pop %v927
      %v943 = vmul.f32 %v942, 0.6931472
      %v944 = vlog2.pop %v929
      %v945 = vmul.f32 %v944, 0.6931472
      %v946 = vlog2.pop %v931
      %v947 = vmul.f32 %v946, 0.6931472
      %v948 = vsub.f32 %v892, %v933
      %v949 = vsub.f32 %v893, %v935
      %v950 = vsub.f32 %v894, %v937
      %v951 = vsub.f32 %v895, %v939
      %v952 = vsub.f32 %v896, %v941
      %v953 = vsub.f32 %v897, %v943
      %v954 = vsub.f32 %v898, %v945
      %v955 = vsub.f32 %v899, %v947
      %v956 = vld [vmem:[%s397] sm:$0xff]
      %v957 = vlaneseq
      %v958 = vand.u32 %v957, 127
      %959 = vset.pattern.permute.xlu0 0
      %960 = vperm.xlu0 %959, %v956
      %v961 = vpop.permute.xlu0 %960
      %vm962 = vcmp.eq.s32.totalorder %v958, %v961
      %v963 = vsel %vm962, 1, 0
      %v964 = vcvt.s32.f32 %v963
      %vm965 = vcmp.eq.s32.totalorder %v958, 0
      %v966 = vsel %vm965, 1, 0
      %v967 = vcvt.s32.f32 %v966
      %v969 = vcombine.high %v967, %v967
      %v971 = vunpack.c.l.s4 1966171168
      %v972 = vunpack.c.0.s8 %v971
      %v973 = vlaneseq
      %v974 = vshrl.u32 %v973, 7
      %v975 = vsub.s32 %v972, %v974
      %v976 = vrot.slane %v967, %v975
      %v978 = vunpack.c.l.s4 1966171168
      %v979 = vunpack.c.0.s8 %v978
      %v980 = vlaneseq
      %v981 = vshrl.u32 %v980, 7
      %v982 = vsub.s32 %v979, %v981
      %v983 = vrot.slane %v969, %v982
      %v984 = vcombine.high %v976, %v976
      %v985 = vcombine.high %v983, %v983
      %v987 = vunpack.c.l.s4 1966171168
      %v988 = vunpack.c.0.s8 %v987
      %v989 = vlaneseq
      %v990 = vshrl.u32 %v989, 7
      %v991 = vsub.s32 %v988, %v990
      %v992 = vrot.slane %v976, %v991
      %v994 = vunpack.c.l.s4 1966171168
      %v995 = vunpack.c.0.s8 %v994
      %v996 = vlaneseq
      %v997 = vshrl.u32 %v996, 7
      %v998 = vsub.s32 %v995, %v997
      %v999 = vrot.slane %v983, %v998
      %v1001 = vunpack.c.l.s4 1966171168
      %v1002 = vunpack.c.0.s8 %v1001
      %v1003 = vlaneseq
      %v1004 = vshrl.u32 %v1003, 7
      %v1005 = vsub.s32 %v1002, %v1004
      %v1006 = vrot.slane %v984, %v1005
      %v1008 = vunpack.c.l.s4 1966171168
      %v1009 = vunpack.c.0.s8 %v1008
      %v1010 = vlaneseq
      %v1011 = vshrl.u32 %v1010, 7
      %v1012 = vsub.s32 %v1009, %v1011
      %v1013 = vrot.slane %v985, %v1012
      %v1014 = vcombine.high %v992, %v992
      %v1015 = vcombine.high %v999, %v999
      %v1016 = vcombine.high %v1006, %v1006
      %v1017 = vcombine.high %v1013, %v1013
      %v1018 = vlaneseq
      %v1019 = vshrl.u32 %v1018, 7
      %v1020 = vsub.s32 0, %v1019
      %v1021 = vrot.slane %v992, %v1020
      %v1022 = vlaneseq
      %v1023 = vshrl.u32 %v1022, 7
      %v1024 = vsub.s32 0, %v1023
      %v1025 = vrot.slane %v1006, %v1024
      %v1026 = vlaneseq
      %v1027 = vshrl.u32 %v1026, 7
      %v1028 = vsub.s32 0, %v1027
      %v1029 = vrot.slane %v1014, %v1028
      %v1030 = vlaneseq
      %v1031 = vshrl.u32 %v1030, 7
      %v1032 = vsub.s32 0, %v1031
      %v1033 = vrot.slane %v1016, %v1032
      %v1034 = vlaneseq
      %v1035 = vshrl.u32 %v1034, 7
      %v1036 = vsub.s32 0, %v1035
      %v1037 = vrot.slane %v999, %v1036
      %v1038 = vlaneseq
      %v1039 = vshrl.u32 %v1038, 7
      %v1040 = vsub.s32 0, %v1039
      %v1041 = vrot.slane %v1013, %v1040
      %v1042 = vlaneseq
      %v1043 = vshrl.u32 %v1042, 7
      %v1044 = vsub.s32 0, %v1043
      %v1045 = vrot.slane %v1015, %v1044
      %v1046 = vlaneseq
      %v1047 = vshrl.u32 %v1046, 7
      %v1048 = vsub.s32 0, %v1047
      %v1049 = vrot.slane %v1017, %v1048
      %v1058 = vmul.f32 %v948, %v1021
      %v1059 = vmul.f32 %v949, %v1025
      %v1060 = vmul.f32 %v950, %v1029
      %v1061 = vmul.f32 %v951, %v1033
      %v1062 = vmul.f32 %v952, %v1037
      %v1063 = vmul.f32 %v953, %v1041
      %v1064 = vmul.f32 %v954, %v1045
      %v1065 = vmul.f32 %v955, %v1049
      %1066 = vadd.xlane.f32.xlu0 %v1058
      %v1067 = vpop.xlane.xlu0 %1066
      %1068 = vadd.xlane.f32.xlu0 %v1059
      %v1069 = vpop.xlane.xlu0 %1068
      %1070 = vadd.xlane.f32.xlu0 %v1060
      %v1071 = vpop.xlane.xlu0 %1070
      %1072 = vadd.xlane.f32.xlu0 %v1061
      %v1073 = vpop.xlane.xlu0 %1072
      %1074 = vadd.xlane.f32.xlu0 %v1062
      %v1075 = vpop.xlane.xlu0 %1074
      %1076 = vadd.xlane.f32.xlu0 %v1063
      %v1077 = vpop.xlane.xlu0 %1076
      %1078 = vadd.xlane.f32.xlu0 %v1064
      %v1079 = vpop.xlane.xlu0 %1078
      %1080 = vadd.xlane.f32.xlu0 %v1065
      %v1081 = vpop.xlane.xlu0 %1080
      %v1083 = vcombine.high %v964, %v964
      %v1085 = vunpack.c.l.s4 1966171168
      %v1086 = vunpack.c.0.s8 %v1085
      %v1087 = vlaneseq
      %v1088 = vshrl.u32 %v1087, 7
      %v1089 = vsub.s32 %v1086, %v1088
      %v1090 = vrot.slane %v964, %v1089
      %v1092 = vunpack.c.l.s4 1966171168
      %v1093 = vunpack.c.0.s8 %v1092
      %v1094 = vlaneseq
      %v1095 = vshrl.u32 %v1094, 7
      %v1096 = vsub.s32 %v1093, %v1095
      %v1097 = vrot.slane %v1083, %v1096
      %v1098 = vcombine.high %v1090, %v1090
      %v1099 = vcombine.high %v1097, %v1097
      %v1101 = vunpack.c.l.s4 1966171168
      %v1102 = vunpack.c.0.s8 %v1101
      %v1103 = vlaneseq
      %v1104 = vshrl.u32 %v1103, 7
      %v1105 = vsub.s32 %v1102, %v1104
      %v1106 = vrot.slane %v1090, %v1105
      %v1108 = vunpack.c.l.s4 1966171168
      %v1109 = vunpack.c.0.s8 %v1108
      %v1110 = vlaneseq
      %v1111 = vshrl.u32 %v1110, 7
      %v1112 = vsub.s32 %v1109, %v1111
      %v1113 = vrot.slane %v1097, %v1112
      %v1115 = vunpack.c.l.s4 1966171168
      %v1116 = vunpack.c.0.s8 %v1115
      %v1117 = vlaneseq
      %v1118 = vshrl.u32 %v1117, 7
      %v1119 = vsub.s32 %v1116, %v1118
      %v1120 = vrot.slane %v1098, %v1119
      %v1122 = vunpack.c.l.s4 1966171168
      %v1123 = vunpack.c.0.s8 %v1122
      %v1124 = vlaneseq
      %v1125 = vshrl.u32 %v1124, 7
      %v1126 = vsub.s32 %v1123, %v1125
      %v1127 = vrot.slane %v1099, %v1126
      %v1128 = vcombine.high %v1106, %v1106
      %v1129 = vcombine.high %v1113, %v1113
      %v1130 = vcombine.high %v1120, %v1120
      %v1131 = vcombine.high %v1127, %v1127
      %v1132 = vlaneseq
      %v1133 = vshrl.u32 %v1132, 7
      %v1134 = vsub.s32 0, %v1133
      %v1135 = vrot.slane %v1106, %v1134
      %v1136 = vlaneseq
      %v1137 = vshrl.u32 %v1136, 7
      %v1138 = vsub.s32 0, %v1137
      %v1139 = vrot.slane %v1120, %v1138
      %v1140 = vlaneseq
      %v1141 = vshrl.u32 %v1140, 7
      %v1142 = vsub.s32 0, %v1141
      %v1143 = vrot.slane %v1128, %v1142
      %v1144 = vlaneseq
      %v1145 = vshrl.u32 %v1144, 7
      %v1146 = vsub.s32 0, %v1145
      %v1147 = vrot.slane %v1130, %v1146
      %v1148 = vlaneseq
      %v1149 = vshrl.u32 %v1148, 7
      %v1150 = vsub.s32 0, %v1149
      %v1151 = vrot.slane %v1113, %v1150
      %v1152 = vlaneseq
      %v1153 = vshrl.u32 %v1152, 7
      %v1154 = vsub.s32 0, %v1153
      %v1155 = vrot.slane %v1127, %v1154
      %v1156 = vlaneseq
      %v1157 = vshrl.u32 %v1156, 7
      %v1158 = vsub.s32 0, %v1157
      %v1159 = vrot.slane %v1129, %v1158
      %v1160 = vlaneseq
      %v1161 = vshrl.u32 %v1160, 7
      %v1162 = vsub.s32 0, %v1161
      %v1163 = vrot.slane %v1131, %v1162
      %v1172 = vmul.f32 %v948, %v1135
      %v1173 = vmul.f32 %v949, %v1139
      %v1174 = vmul.f32 %v950, %v1143
      %v1175 = vmul.f32 %v951, %v1147
      %v1176 = vmul.f32 %v952, %v1151
      %v1177 = vmul.f32 %v953, %v1155
      %v1178 = vmul.f32 %v954, %v1159
      %v1179 = vmul.f32 %v955, %v1163
      %1180 = vadd.xlane.f32.xlu0 %v1172
      %v1181 = vpop.xlane.xlu0 %1180
      %1182 = vadd.xlane.f32.xlu0 %v1173
      %v1183 = vpop.xlane.xlu0 %1182
      %1184 = vadd.xlane.f32.xlu0 %v1174
      %v1185 = vpop.xlane.xlu0 %1184
      %1186 = vadd.xlane.f32.xlu0 %v1175
      %v1187 = vpop.xlane.xlu0 %1186
      %1188 = vadd.xlane.f32.xlu0 %v1176
      %v1189 = vpop.xlane.xlu0 %1188
      %1190 = vadd.xlane.f32.xlu0 %v1177
      %v1191 = vpop.xlane.xlu0 %1190
      %1192 = vadd.xlane.f32.xlu0 %v1178
      %v1193 = vpop.xlane.xlu0 %1192
      %1194 = vadd.xlane.f32.xlu0 %v1179
      %v1195 = vpop.xlane.xlu0 %1194
      %v1204 = vlaneseq
      %v1205 = vshrl.u32 %v1204, 7
      %v1206 = vsub.s32 %v958, %v1205
      %v1207 = vrot.slane %v1067, %v1206
      %v1208 = vlaneseq
      %v1209 = vshrl.u32 %v1208, 7
      %v1210 = vsub.s32 %v958, %v1209
      %v1211 = vrot.slane %v1069, %v1210
      %v1212 = vlaneseq
      %v1213 = vshrl.u32 %v1212, 7
      %v1214 = vsub.s32 %v958, %v1213
      %v1215 = vrot.slane %v1071, %v1214
      %v1216 = vlaneseq
      %v1217 = vshrl.u32 %v1216, 7
      %v1218 = vsub.s32 %v958, %v1217
      %v1219 = vrot.slane %v1073, %v1218
      %v1220 = vlaneseq
      %v1221 = vshrl.u32 %v1220, 7
      %v1222 = vsub.s32 %v958, %v1221
      %v1223 = vrot.slane %v1075, %v1222
      %v1224 = vlaneseq
      %v1225 = vshrl.u32 %v1224, 7
      %v1226 = vsub.s32 %v958, %v1225
      %v1227 = vrot.slane %v1077, %v1226
      %v1228 = vlaneseq
      %v1229 = vshrl.u32 %v1228, 7
      %v1230 = vsub.s32 %v958, %v1229
      %v1231 = vrot.slane %v1079, %v1230
      %v1232 = vlaneseq
      %v1233 = vshrl.u32 %v1232, 7
      %v1234 = vsub.s32 %v958, %v1233
      %v1235 = vrot.slane %v1081, %v1234
      %vm1236 = vcmask 1041409
      %v1237 = vsel %vm1236, %v1211, %v1207
      %vm1238 = vcmask 1042434
      %v1239 = vsel %vm1238, %v1215, %v1237
      %vm1240 = vcmask 1043459
      %v1241 = vsel %vm1240, %v1219, %v1239
      %vm1242 = vcmask 1044484
      %v1243 = vsel %vm1242, %v1223, %v1241
      %vm1244 = vcmask 1045509
      %v1245 = vsel %vm1244, %v1227, %v1243
      %vm1246 = vcmask 1046534
      %v1247 = vsel %vm1246, %v1231, %v1245
      %vm1248 = vcmask 1047559
      %v1249 = vsel %vm1248, %v1235, %v1247
      %vm1251 = vcmask 64512
      %1252 = vst.msk [vmem:[%s404] sm:$0xff] %vm1251, %v1249
      %v1261 = vlaneseq
      %v1262 = vshrl.u32 %v1261, 7
      %v1263 = vsub.s32 %v958, %v1262
      %v1264 = vrot.slane %v1181, %v1263
      %v1265 = vlaneseq
      %v1266 = vshrl.u32 %v1265, 7
      %v1267 = vsub.s32 %v958, %v1266
      %v1268 = vrot.slane %v1183, %v1267
      %v1269 = vlaneseq
      %v1270 = vshrl.u32 %v1269, 7
      %v1271 = vsub.s32 %v958, %v1270
      %v1272 = vrot.slane %v1185, %v1271
      %v1273 = vlaneseq
      %v1274 = vshrl.u32 %v1273, 7
      %v1275 = vsub.s32 %v958, %v1274
      %v1276 = vrot.slane %v1187, %v1275
      %v1277 = vlaneseq
      %v1278 = vshrl.u32 %v1277, 7
      %v1279 = vsub.s32 %v958, %v1278
      %v1280 = vrot.slane %v1189, %v1279
      %v1281 = vlaneseq
      %v1282 = vshrl.u32 %v1281, 7
      %v1283 = vsub.s32 %v958, %v1282
      %v1284 = vrot.slane %v1191, %v1283
      %v1285 = vlaneseq
      %v1286 = vshrl.u32 %v1285, 7
      %v1287 = vsub.s32 %v958, %v1286
      %v1288 = vrot.slane %v1193, %v1287
      %v1289 = vlaneseq
      %v1290 = vshrl.u32 %v1289, 7
      %v1291 = vsub.s32 %v958, %v1290
      %v1292 = vrot.slane %v1195, %v1291
      %v1293 = vsel %vm1236, %v1268, %v1264
      %v1294 = vsel %vm1238, %v1272, %v1293
      %v1295 = vsel %vm1240, %v1276, %v1294
      %v1296 = vsel %vm1242, %v1280, %v1295
      %v1297 = vsel %vm1244, %v1284, %v1296
      %v1298 = vsel %vm1246, %v1288, %v1297
      %v1299 = vsel %vm1248, %v1292, %v1298
      %1301 = vst.msk [vmem:[%s411] sm:$0xff] %vm1251, %v1299
      %p1302 = scmp.lt.s32.totalorder %s25, 1
      %s1303 = scalar_select %p1302, %s25, 1
      %p1304 = scmp.lt.s32.totalorder %s26, 0
      %s1305 = scalar_select %p1304, %s26, 0
      %s1306 = sadd.s32 %s1305, %s1303
      %s1307 = smul.addr %s1306, 8
      %s1308 = scalar_lea.vmem %s8, %s1307
      %p1309 = scmp.lt.s32.totalorder %s25, 1
      %s1310 = scalar_select %p1309, %s25, 1
      %p1311 = scmp.lt.s32.totalorder %s26, 0
      %s1312 = scalar_select %p1311, %s26, 0
      %s1313 = sadd.s32 %s1312, %s1310
      %s1314 = smul.addr %s1313, 8
      %s1315 = scalar_lea.vmem %s9, %s1314
      // Predicated region
      $region53: #{transducer_forward.1} parent=51 // pred_check
        %p1316 = pneg %p238
      $region54: #{transducer_forward.1} parent=51 // pred_check_branch
        %1318 = sbr.rel (%p1316) target = $region56
      $region55: #{transducer_forward.1} parent=51 // pred_region
        _
      $region56: #{transducer_forward.1} parent=51 // pred_fallthru
        _
      // Predicated region
      $region57: #{transducer_forward.1} parent=51 // pred_check
        %p1319 = pneg %p266
      $region58: #{transducer_forward.1} parent=51 // pred_check_branch
        %1321 = sbr.rel (%p1319) target = $region60
      $region59: #{transducer_forward.1} parent=51 // pred_region
        _
      $region60: #{transducer_forward.1} parent=51 // pred_fallthru
        _
    $region52: #{transducer_forward.1} parent=5 // pred_fallthru
      _
    %p1322 = scmp.le.s32.totalorder 2, %s16
    // Predicated region
    $region61: #{transducer_forward.1} parent=5 // pred_check
      %p1323 = pneg %p1322
    $region62: #{transducer_forward.1} parent=5 // pred_check_branch
      %1325 = sbr.rel (%p1323) target = $region64
    $region63: #{transducer_forward.1} parent=5 // pred_region
      %s1326 = ssub.s32 %s16, 2
      // Predicated region
      $region65: #{transducer_forward.1} parent=63 // pred_check
        %p1327 = pneg %p244
      $region66: #{transducer_forward.1} parent=63 // pred_check_branch
        %1329 = sbr.rel (%p1327) target = $region68
      $region67: #{transducer_forward.1} parent=63 // pred_region
        %p1330 = scmp.lt.s32.totalorder %s27, 1
        %s1331 = scalar_select %p1330, %s27, 1
        %p1332 = scmp.lt.s32.totalorder %s28, 0
        %s1333 = scalar_select %p1332, %s28, 0
        %s1334 = sadd.s32 %s1333, %s1331
        %s1335 = smul.addr %s1334, 8
        %s1336 = scalar_lea.vmem %s8, %s1335
      $region68: #{transducer_forward.1} parent=63 // pred_fallthru
        _
      // Predicated region
      $region69: #{transducer_forward.1} parent=63 // pred_check
        %p1337 = pneg %p272
      $region70: #{transducer_forward.1} parent=63 // pred_check_branch
        %1339 = sbr.rel (%p1337) target = $region72
      $region71: #{transducer_forward.1} parent=63 // pred_region
        %p1340 = scmp.lt.s32.totalorder %s27, 1
        %s1341 = scalar_select %p1340, %s27, 1
        %p1342 = scmp.lt.s32.totalorder %s28, 0
        %s1343 = scalar_select %p1342, %s28, 0
        %s1344 = sadd.s32 %s1343, %s1341
        %s1345 = smul.addr %s1344, 8
        %s1346 = scalar_lea.vmem %s9, %s1345
      $region72: #{transducer_forward.1} parent=63 // pred_fallthru
        _
    $region64: #{transducer_forward.1} parent=5 // pred_fallthru
      _
  $region6: #{transducer_forward.1} parent=0 // loop_footer
    %s20 = sadd.s32 1, %s16
  $region7: #{transducer_forward.1} parent=0 // loop_footer_branch
    %15 = sbr.rel target = $region3
  $region8: #{transducer_forward.1} parent=0 // loop_exit
    _

</llo_original>
